<compile_context>
chip_gen: v5e
topology: v5e:2x2
jax: 0.10.0
libtpu: 0.0.40
codegen_flags: <defaults>
</compile_context>

<pallas_src>
import functools

import jax
import jax.numpy as jnp
from jax.experimental import pallas as pl
from jax.experimental.pallas import tpu as pltpu


def _round_up(n, mult):
    return ((n + mult - 1) // mult) * mult


def _choose_tiles(B, C, D, block_b, block_c, budget_bytes):
    """Pick (TB, TC) under a VMEM budget (double-buffered bf16 in, f32 out)."""
    TB = min(block_b, _round_up(B, 8))
    TC = min(block_c, _round_up(C, 128))

    def footprint(tb, tc):
        return (2 * tb * D * 2        # x tile, bf16, double-buffered
                + 2 * tc * D * 2      # W tile, bf16, double-buffered
                + 2 * tb * tc * 4)    # output tile, f32, double-buffered

    while footprint(TB, TC) > budget_bytes and TC > 128:
        TC = max(128, TC // 2)
    while footprint(TB, TC) > budget_bytes and TB > 8:
        TB = max(8, TB // 2)
    return TB, TC, footprint(TB, TC)


def _cosface_matmul_kernel(x_ref, w_ref, o_ref):
    # x_ref: [TB, D] bf16 (already s * normalize(x)); w_ref: [TC, D] bf16
    # (already normalize(W)).  NT contraction over D on the MXU with f32
    # accumulation; the store is the only epilogue work.
    o_ref[...] = jax.lax.dot_general(
        x_ref[...], w_ref[...],
        dimension_numbers=(((1,), (1,)), ((), ())),
        preferred_element_type=jnp.float32)


@functools.partial(jax.jit, static_argnames=("s", "m", "block_b", "block_c"))
def cosface_classifier(x, weight, target, *, s, m, block_b=256, block_c=1024):
    """x: [B, D] float, weight: [C, D] float, target: [B] int -> [B, C] f32."""
    B, D = x.shape
    C, D2 = weight.shape
    assert D2 == D

    # Conservative VMEM budget (safe on v7x's 64 MiB and v5e scoped limits).
    budget = 40 << 20
    TB, TC, footprint = _choose_tiles(B, C, D, block_b, block_c, budget)
    Bp = _round_up(B, TB)
    Cp = _round_up(C, TC)

    # Fused prolog (single XLA pass per operand, under this jit):
    # normalize, fold `s` into x, cast to bf16, pad to tile multiples.
    x32 = x.astype(jnp.float32)
    w32 = weight.astype(jnp.float32)
    xn = x32 / jnp.maximum(jnp.linalg.norm(x32, axis=-1, keepdims=True), 1e-12)
    wn = w32 / jnp.maximum(jnp.linalg.norm(w32, axis=-1, keepdims=True), 1e-12)
    xs = (s * xn).astype(jnp.bfloat16)
    wn = wn.astype(jnp.bfloat16)
    if Bp != B:
        xs = jnp.pad(xs, ((0, Bp - B), (0, 0)))
    if Cp != C:
        wn = jnp.pad(wn, ((0, Cp - C), (0, 0)))   # zero rows -> zero logits

    # Class tiles OUTER (slow), batch tiles INNER (fast): the W tile index
    # depends only on the outer axis, so W is streamed from HBM exactly once.
    n_ctiles, n_btiles = Cp // TC, Bp // TB
    grid = (n_ctiles, n_btiles)
    dim_sems = ("parallel", "parallel" if n_ctiles == 1 else "arbitrary")

    vmem_limit = min(max(footprint + (8 << 20), 32 << 20), 56 << 20)

    out = pl.pallas_call(
        _cosface_matmul_kernel,
        out_shape=jax.ShapeDtypeStruct((Bp, Cp), jnp.float32),
        grid=grid,
        in_specs=[
            pl.BlockSpec((TB, D), lambda j, i: (i, 0)),   # x tile (resident if n_btiles==1)
            pl.BlockSpec((TC, D), lambda j, i: (j, 0)),   # W tile, read once
        ],
        out_specs=pl.BlockSpec((TB, TC), lambda j, i: (i, j)),
        compiler_params=pltpu.CompilerParams(
            dimension_semantics=dim_sems,
            vmem_limit_bytes=int(vmem_limit)),
        cost_estimate=pl.CostEstimate(
            flops=2 * Bp * Cp * D,
            transcendentals=0,
            bytes_accessed=int(xs.size * 2 + wn.size * 2 + Bp * Cp * 4)),
    )(xs, wn)

    logits = out[:B, :C] if (Bp != B or Cp != C) else out

    # Additive margin on the target class: O(B) scatter, off the hot loop.
    rows = jnp.arange(B)
    logits = logits.at[rows, target.astype(jnp.int32)].add(jnp.float32(-s * m))
    return logits


def _xavier_uniform(key, shape):
    # Matches torch.nn.init.xavier_uniform_ for a [fan_out, fan_in] matrix.
    fan_out, fan_in = shape
    limit = (6.0 / (fan_in + fan_out)) ** 0.5
    return jax.random.uniform(key, shape, jnp.float32, -limit, limit)


if __name__ == "__main__":
    # Small, deterministic problem: batch=8, embdim=32, num_classes=16.
    num_classes, embdim = 16, 32
    s_scale, margin = 30.0, 0.40
    batch = 8

    key = jax.random.PRNGKey(0)
    k_x, k_w, k_t = jax.random.split(key, 3)

    feature_vectors = jax.random.normal(k_x, (batch, embdim), jnp.float32)
    weight = _xavier_uniform(k_w, (num_classes, embdim))
    target = jax.random.randint(k_t, (batch,), 0, num_classes, jnp.int32)

    out = cosface_classifier(feature_vectors, weight, target, s=s_scale, m=margin)
    out = jax.block_until_ready(out)
    assert out.shape == (batch, num_classes)

    one_hot = jax.nn.one_hot(target, num_classes, dtype=jnp.float32)

    # Reference 1: exact PyTorch AddMarginProduct semantics in f32.
    xn = feature_vectors / jnp.maximum(
        jnp.linalg.norm(feature_vectors, axis=-1, keepdims=True), 1e-12)
    wn = weight / jnp.maximum(
        jnp.linalg.norm(weight, axis=-1, keepdims=True), 1e-12)
    ref_f32 = s_scale * (xn @ wn.T - margin * one_hot)
    # bf16 MXU operands bound the cosine error at ~2^-8, i.e. ~s * 4e-3 here.
    assert jnp.allclose(out, ref_f32, atol=2e-1), float(
        jnp.max(jnp.abs(out - ref_f32)))

    # Reference 2: mirror the kernel's bf16-operand / f32-accumulate math.
    xs_bf = (s_scale * xn).astype(jnp.bfloat16).astype(jnp.float32)
    wn_bf = wn.astype(jnp.bfloat16).astype(jnp.float32)
    ref_bf = xs_bf @ wn_bf.T - (s_scale * margin) * one_hot
    assert jnp.allclose(out, ref_bf, atol=2e-2), float(
        jnp.max(jnp.abs(out - ref_bf)))

    print("KERNEL_OK")
</pallas_src>

<mosaic_0001>
module attributes {stable_mosaic.version = 11 : i64} {
  func.func @_cosface_matmul_kernel(%arg0: i32, %arg1: i32, %arg2: memref<8x32xbf16, #tpu.memory_space<vmem>>, %arg3: memref<128x32xbf16, #tpu.memory_space<vmem>>, %arg4: memref<8x128xf32, #tpu.memory_space<vmem>>) attributes {dimension_semantics = [#tpu.dimension_semantics<parallel>, #tpu.dimension_semantics<parallel>], iteration_bounds = array<i64: 1, 1>, scalar_prefetch = 0 : i64, scratch_operands = 0 : i64, tpu.core_type = #tpu.core_type<tc>, window_params = [{transform_indices = @transform_0, window_bounds = array<i64: 8, 32>}, {transform_indices = @transform_1, window_bounds = array<i64: 128, 32>}, {transform_indices = @transform_2, window_bounds = array<i64: 8, 128>}]} {
    %c0 = arith.constant 0 : index
    %c0_0 = arith.constant 0 : index
    %0 = vector.load %arg2[%c0, %c0_0] : memref<8x32xbf16, #tpu.memory_space<vmem>>, vector<8x32xbf16>
    %c0_1 = arith.constant 0 : index
    %c0_2 = arith.constant 0 : index
    %1 = vector.load %arg3[%c0_1, %c0_2] : memref<128x32xbf16, #tpu.memory_space<vmem>>, vector<128x32xbf16>
    %cst = arith.constant dense<0.000000e+00> : vector<8x128xf32>
    %2 = tpu.matmul %0, %1, %cst {dimension_numbers = #tpu.dot_dimension_numbers<[1], [1], [0], [0], [0, 0, 1, 0], [], []>} : vector<8x32xbf16>, vector<128x32xbf16>, vector<8x128xf32> -> vector<8x128xf32>
    %c0_3 = arith.constant 0 : index
    %c0_4 = arith.constant 0 : index
    %3 = vector.load %arg4[%c0_3, %c0_4] : memref<8x128xf32, #tpu.memory_space<vmem>>, vector<8x128xf32>
    tpu.vector_store %arg4[%c0_3, %c0_4], %2 {strides = array<i32>} : memref<8x128xf32, #tpu.memory_space<vmem>>, vector<8x128xf32>,
    return
  }
  func.func @transform_0(%arg0: i32, %arg1: i32) -> (i32, i32) {
    %c0_i32 = arith.constant 0 : i32
    %c0_i32_0 = arith.constant 0 : i32
    return %arg1, %c0_i32 : i32, i32
  }
  func.func @transform_1(%arg0: i32, %arg1: i32) -> (i32, i32) {
    %c0_i32 = arith.constant 0 : i32
    %c0_i32_0 = arith.constant 0 : i32
    return %arg0, %c0_i32 : i32, i32
  }
  func.func @transform_2(%arg0: i32, %arg1: i32) -> (i32, i32) {
    %c0_i32 = arith.constant 0 : i32
    return %arg1, %arg0 : i32, i32
  }
}

</mosaic_0001>

<llo_original>
// kernel: cosface_classifier.1
$region0: #{cosface_classifier.1}
  #allocation0 [shape = 'u32[]', space=smem, size = 0x4, offset = 0x4, fixed_abs, tag = 'smem constant byte address 0x4 - core index']
  #allocation1 [shape = 'u32[72,128]{1,0:T(1,128)}', space=vmem, size = 0x9000, scoped, tag = 'internal scratch']
  %s0 = inlined_call_operand.vmem [shape: bf16[8,32], index: 0, kind: input, shape index: {}]
  %s1 = inlined_call_operand.vmem [shape: bf16[128,32], index: 1, kind: input, shape index: {}]
  %s2 = inlined_call_operand.hbm [shape: f32[8,128], index: 2, kind: output, shape index: {}]
  %s3 = sld [smem:[#allocation0]]
  $region18: #{cosface_classifier.1} parent=0
    _
  %s5 = ssub.s32 1, %s3
  %s6 = scalar_select 0, %s5, %s3
  $region1: #{cosface_classifier.1} parent=0
    #allocation2 [shape = 'u8[4096]{0}', space=vmem, size = 0x1000, scoped, tag = 'output window, operand 0, single buffered']
    #allocation3 [shape = 's32[1]{0}', space=sflag, size = 0x4, scoped, tag = 'scoped memory for cosface_classifier.1']
    %7 = vsyncpa [#allocation3], 0
    // Predicated region
    $region2: #{cosface_classifier.1} parent=1 // pred_check
      _
    $region3: #{cosface_classifier.1} parent=1 // pred_check_branch
      %9 = sbr.rel (0) target = $region5
    $region4: #{cosface_classifier.1} parent=1 // pred_region
      _
    $region5: #{cosface_classifier.1} parent=1 // pred_fallthru
      _
    // Predicated region
    $region6: #{cosface_classifier.1} parent=1 // pred_check
      _
    $region7: #{cosface_classifier.1} parent=1 // pred_check_branch
      %11 = sbr.rel (0) target = $region9
    $region8: #{cosface_classifier.1} parent=1 // pred_region
      _
    $region9: #{cosface_classifier.1} parent=1 // pred_fallthru
      _
    %v12 = vld [vmem:[%s0] sm:$0xf]
    %v13 = vld [vmem:[%s1] sm:$0xf]
    %v14 = vld [vmem:[%s1 + $0x4] sm:$0xf]
    %v15 = vld [vmem:[%s1 + $0x8] sm:$0xf]
    %v16 = vld [vmem:[%s1 + $0xc] sm:$0xf]
    %v17 = vld [vmem:[%s1 + $0x10] sm:$0xf]
    %v18 = vld [vmem:[%s1 + $0x14] sm:$0xf]
    %v19 = vld [vmem:[%s1 + $0x18] sm:$0xf]
    %v20 = vld [vmem:[%s1 + $0x1c] sm:$0xf]
    %v21 = vld [vmem:[%s1 + $0x20] sm:$0xf]
    %v22 = vld [vmem:[%s1 + $0x24] sm:$0xf]
    %v23 = vld [vmem:[%s1 + $0x28] sm:$0xf]
    %v24 = vld [vmem:[%s1 + $0x2c] sm:$0xf]
    %v25 = vld [vmem:[%s1 + $0x30] sm:$0xf]
    %v26 = vld [vmem:[%s1 + $0x34] sm:$0xf]
    %v27 = vld [vmem:[%s1 + $0x38] sm:$0xf]
    %v28 = vld [vmem:[%s1 + $0x3c] sm:$0xf]
    %v45 = vunpack.c.l.b16 %v13
    %v46 = vunpack.c.l.b16 %v14
    %v47 = vunpack.c.l.b16 %v15
    %v48 = vunpack.c.l.b16 %v16
    %v49 = vunpack.c.l.b16 %v17
    %v50 = vunpack.c.l.b16 %v18
    %v51 = vunpack.c.l.b16 %v19
    %v52 = vunpack.c.l.b16 %v20
    %v53 = vunpack.c.l.b16 %v21
    %v54 = vunpack.c.l.b16 %v22
    %v55 = vunpack.c.l.b16 %v23
    %v56 = vunpack.c.l.b16 %v24
    %v57 = vunpack.c.l.b16 %v25
    %v58 = vunpack.c.l.b16 %v26
    %v59 = vunpack.c.l.b16 %v27
    %v60 = vunpack.c.l.b16 %v28
    %v61 = vpack.c.b16 %v46, %v45
    %v62 = vpack.c.b16 %v48, %v47
    %v63 = vpack.c.b16 %v50, %v49
    %v64 = vpack.c.b16 %v52, %v51
    %v65 = vpack.c.b16 %v54, %v53
    %v66 = vpack.c.b16 %v56, %v55
    %v67 = vpack.c.b16 %v58, %v57
    %v68 = vpack.c.b16 %v60, %v59
    %vm69 = vcmask 261120
    %v71 = vsel %vm69, %v12, 0
    %v74 = vsel %vm69, %v61, 0
    %v77 = vsel %vm69, %v62, 0
    %v80 = vsel %vm69, %v63, 0
    %v83 = vsel %vm69, %v64, 0
    %v86 = vsel %vm69, %v65, 0
    %v89 = vsel %vm69, %v66, 0
    %v92 = vsel %vm69, %v67, 0
    %v95 = vsel %vm69, %v68, 0
    %97 = vmatpush.bf16.xpose.msra.mxu0 %v95
    %98 = vmatpush.bf16.xpose.msra.mxu0 %v92
    %99 = vmatpush.bf16.xpose.msra.mxu0 %v89
    %100 = vmatpush.bf16.xpose.msra.mxu0 %v86
    %101 = vmatpush.bf16.xpose.msra.mxu0 %v83
    %102 = vmatpush.bf16.xpose.msra.mxu0 %v80
    %103 = vmatpush.bf16.xpose.msra.mxu0 %v77
    %104 = vmatpush.bf16.xpose.msra.mxu0 %v74
    %105 = vmatmul.bf16.gmra.mxu0 %v71
    %v106 = vpop.f32.mrf.mxu0
    %v107 = vadd.f32 0.0, %v106
    %v108 = vpop.f32.mrf.mxu0
    %109 = vdwg.mxu0
    %110 = vst [vmem:[#allocation2] sm:$0xff] %v107
    // Predicated region
    $region10: #{cosface_classifier.1} parent=1 // pred_check
      _
    $region11: #{cosface_classifier.1} parent=1 // pred_check_branch
      %112 = sbr.rel (0) target = $region13
    $region12: #{cosface_classifier.1} parent=1 // pred_region
      %114 = vsyncadd [#allocation3], 0
      %s116 = sshll.u32 [#allocation2], 4
      %s117 = int_to_ptr.vmem [resolvable:$true] %s116
      %s118 = sshll.u32 %s2, 4
      %s119 = int_to_ptr.hbm [resolvable:$true] %s118
      %121 = dma.vmem_to_hbm [thread:$0]  %s117, 128, %s119, [#allocation3]
    $region13: #{cosface_classifier.1} parent=1 // pred_fallthru
      _
    // Predicated region
    $region14: #{cosface_classifier.1} parent=1 // pred_check
      _
    $region15: #{cosface_classifier.1} parent=1 // pred_check_branch
      %123 = sbr.rel (0) target = $region17
    $region16: #{cosface_classifier.1} parent=1 // pred_region
      %125 = dma.done [#allocation3], 128
    $region17: #{cosface_classifier.1} parent=1 // pred_fallthru
      _
    %126 = vsyncpa [#allocation3], 1

</llo_original>
